<compile_context>
chip_gen: v6e
topology: v6e:2x2x1
jax: 0.10.0
libtpu: 0.0.40
codegen_flags: <defaults>
</compile_context>

<pallas_src>
import jax
import jax.numpy as jnp
from jax import lax
from jax.experimental import pallas as pl
from jax.experimental.pallas import tpu as pltpu


def _round_up(v, m):
    return ((v + m - 1) // m) * m


def _diffaug_kernel(b_ref, s_ref, c_ref, dh_ref, dw_ref, x_ref, o_ref, pad_ref):
    # b/s/c: (N,) f32 SMEM; dh/dw: (N,) i32 SMEM
    # x_ref / o_ref: (C, H, W) VMEM blocks (batch dim squeezed)
    # pad_ref: (C, H + 2*row_pad, W) VMEM scratch (zero-padded row buffer)
    n = pl.program_id(0)
    C, H, W = x_ref.shape
    row_pad = (pad_ref.shape[1] - H) // 2

    b = b_ref[n]
    s = s_ref[n]
    con = c_ref[n]
    dh = dh_ref[n]
    dw = dw_ref[n]

    x = x_ref[...]                                         # (C, H, W)

    # -- color: brightness -> saturation -> contrast (pure VPU) --
    y = x + b - 0.5
    m_pix = jnp.mean(y, axis=0, keepdims=True)             # per-pixel channel mean
    y = (s * 2.0) * (y - m_pix) + m_pix
    m_all = jnp.mean(y)                                    # per-sample global mean
    y = (con + 0.5) * (y - m_all) + m_all

    # -- translation, row direction: zero pad bands + dynamic sublane slice --
    zero_band = jnp.zeros((C, row_pad, W), dtype=pad_ref.dtype)
    pad_ref[:, 0:row_pad, :] = zero_band
    pad_ref[:, row_pad + H:row_pad + H + row_pad, :] = zero_band
    pad_ref[:, row_pad:row_pad + H, :] = y.astype(pad_ref.dtype)
    yr = pad_ref[:, pl.ds(row_pad + dh, H), :]             # (C, H, W) zero-filled rows

    # -- translation, column (lane) direction: in-kernel exact one-hot matmul --
    #   R[j_in, j_out] = 1  iff  j_in == j_out + dw   (out-of-range cols -> all-zero)
    j_in = lax.broadcasted_iota(jnp.int32, (W, W), 0)
    j_out = lax.broadcasted_iota(jnp.int32, (W, W), 1)
    r = (j_in == (j_out + dw)).astype(yr.dtype)
    out = jnp.dot(yr.reshape(C * H, W), r,
                  preferred_element_type=jnp.float32)      # (C*H, W)
    o_ref[...] = out.reshape(C, H, W).astype(o_ref.dtype)


def diffaug_pallas(x, b, s, c, dh, dw, *, translation_ratio=1.0 / 8.0):
    """Pallas implementation of DiffAug forward with given per-sample randoms."""
    N, C, H, W = x.shape
    shift_h = int(round(translation_ratio * H))
    row_pad = _round_up(max(shift_h, 1), 8)                # 8-aligned zero bands

    return pl.pallas_call(
        _diffaug_kernel,
        out_shape=jax.ShapeDtypeStruct((N, C, H, W), x.dtype),
        grid_spec=pltpu.PrefetchScalarGridSpec(
            num_scalar_prefetch=0,
            grid=(N,),
            in_specs=[
                pl.BlockSpec(memory_space=pltpu.MemorySpace.SMEM),   # b
                pl.BlockSpec(memory_space=pltpu.MemorySpace.SMEM),   # s
                pl.BlockSpec(memory_space=pltpu.MemorySpace.SMEM),   # c
                pl.BlockSpec(memory_space=pltpu.MemorySpace.SMEM),   # dh
                pl.BlockSpec(memory_space=pltpu.MemorySpace.SMEM),   # dw
                pl.BlockSpec((pl.Squeezed(), C, H, W), lambda n: (n, 0, 0, 0)),
            ],
            out_specs=pl.BlockSpec((pl.Squeezed(), C, H, W), lambda n: (n, 0, 0, 0)),
            scratch_shapes=[pltpu.VMEM((C, H + 2 * row_pad, W), x.dtype)],
        ),
        compiler_params=pltpu.CompilerParams(
            dimension_semantics=("parallel",),
        ),
    )(b, s, c, dh, dw, x)


def diffaug_forward(x, key, *, translation_ratio=1.0 / 8.0):
    """Draw the per-sample randoms (like torch.rand / torch.randint) and run the kernel."""
    N, _, H, W = x.shape
    shift_h = int(round(translation_ratio * H))
    shift_w = int(round(translation_ratio * W))
    kb, ks, kc, kh, kw = jax.random.split(key, 5)
    b = jax.random.uniform(kb, (N,), dtype=jnp.float32)
    s = jax.random.uniform(ks, (N,), dtype=jnp.float32)
    c = jax.random.uniform(kc, (N,), dtype=jnp.float32)
    dh = jax.random.randint(kh, (N,), -shift_h, shift_h, dtype=jnp.int32)  # [low, high)
    dw = jax.random.randint(kw, (N,), -shift_w, shift_w, dtype=jnp.int32)
    out = diffaug_pallas(x, b, s, c, dh, dw, translation_ratio=translation_ratio)
    return out, (b, s, c, dh, dw)


def _reference_diffaug(x, b, s, c, dh, dw):
    """Pure-JAX mirror of the PyTorch forward (brightness, saturation, contrast, translation)."""
    N, C, H, W = x.shape
    b4 = b[:, None, None, None]
    s4 = s[:, None, None, None]
    c4 = c[:, None, None, None]
    y = x + b4 - 0.5
    m = y.mean(axis=1, keepdims=True)
    y = s4 * 2.0 * (y - m) + m
    m = y.mean(axis=(1, 2, 3), keepdims=True)
    y = (c4 + 0.5) * (y - m) + m
    # translation: F.pad by 1 + clamped gather (out-of-range indices land on zero pad)
    y_pad = jnp.pad(y, ((0, 0), (0, 0), (1, 1), (1, 1)))
    gb = jnp.arange(N)[:, None, None]
    gh = jnp.clip(jnp.arange(H)[None, :, None] + dh[:, None, None] + 1, 0, H + 1)
    gw = jnp.clip(jnp.arange(W)[None, None, :] + dw[:, None, None] + 1, 0, W + 1)
    out = y_pad.transpose(0, 2, 3, 1)[gb, gh, gw]          # (N, H, W, C)
    return out.transpose(0, 3, 1, 2)


if __name__ == "__main__":
    key = jax.random.PRNGKey(0)
    N, C, H, W = 2, 4, 16, 16
    kx, kaug = jax.random.split(key)
    x = jax.random.normal(kx, (N, C, H, W), dtype=jnp.float32)

    out, params = diffaug_forward(x, kaug)
    out = jax.block_until_ready(out)

    ref = _reference_diffaug(x, *params)

    assert out.shape == (N, C, H, W), out.shape
    assert out.dtype == x.dtype, out.dtype
    assert jnp.allclose(out, ref, atol=1e-4, rtol=1e-4), "mismatch vs reference DiffAug"

    print("KERNEL_OK")
</pallas_src>

<mosaic_0001>
module attributes {stable_mosaic.version = 11 : i64} {
  func.func @_diffaug_kernel(%arg0: i32, %arg1: memref<2xf32, #tpu.memory_space<smem>>, %arg2: memref<2xf32, #tpu.memory_space<smem>>, %arg3: memref<2xf32, #tpu.memory_space<smem>>, %arg4: memref<2xi32, #tpu.memory_space<smem>>, %arg5: memref<2xi32, #tpu.memory_space<smem>>, %arg6: memref<1x4x16x16xf32, #tpu.memory_space<vmem>>, %arg7: memref<1x4x16x16xf32, #tpu.memory_space<vmem>>, %arg8: memref<4x32x16xf32, #tpu.memory_space<vmem>>) attributes {dimension_semantics = [#tpu.dimension_semantics<parallel>], iteration_bounds = array<i64: 2>, scalar_prefetch = 0 : i64, scratch_operands = 1 : i64, tpu.core_type = #tpu.core_type<tc>, window_params = [{transform_indices = @transform_0, window_bounds = array<i64: 2>}, {transform_indices = @transform_1, window_bounds = array<i64: 2>}, {transform_indices = @transform_2, window_bounds = array<i64: 2>}, {transform_indices = @transform_3, window_bounds = array<i64: 2>}, {transform_indices = @transform_4, window_bounds = array<i64: 2>}, {transform_indices = @transform_5, window_bounds = array<i64: 1, 4, 16, 16>}, {transform_indices = @transform_6, window_bounds = array<i64: 1, 4, 16, 16>}]} {
    %0 = arith.index_cast %arg0 : i32 to index
    %1 = memref.load %arg1[%0] : memref<2xf32, #tpu.memory_space<smem>>
    %2 = arith.index_cast %arg0 : i32 to index
    %3 = memref.load %arg2[%2] : memref<2xf32, #tpu.memory_space<smem>>
    %4 = arith.index_cast %arg0 : i32 to index
    %5 = memref.load %arg3[%4] : memref<2xf32, #tpu.memory_space<smem>>
    %6 = arith.index_cast %arg0 : i32 to index
    %7 = memref.load %arg4[%6] : memref<2xi32, #tpu.memory_space<smem>>
    %8 = arith.index_cast %arg0 : i32 to index
    %9 = memref.load %arg5[%8] : memref<2xi32, #tpu.memory_space<smem>>
    %c0 = arith.constant 0 : index
    %c0_0 = arith.constant 0 : index
    %c0_1 = arith.constant 0 : index
    %c0_2 = arith.constant 0 : index
    %10 = vector.load %arg6[%c0, %c0_0, %c0_1, %c0_2] : memref<1x4x16x16xf32, #tpu.memory_space<vmem>>, vector<1x4x16x16xf32>
    %11 = vector.shape_cast %10 : vector<1x4x16x16xf32> to vector<4x16x16xf32>
    %12 = vector.broadcast %1 : f32 to vector<4x16x16xf32>
    %13 = arith.addf %11, %12 : vector<4x16x16xf32>
    %cst = arith.constant 5.000000e-01 : f32
    %14 = vector.broadcast %cst : f32 to vector<4x16x16xf32>
    %15 = arith.subf %13, %14 : vector<4x16x16xf32>
    %cst_3 = arith.constant dense<0.000000e+00> : vector<16x16xf32>
    %16 = vector.multi_reduction <add>, %15, %cst_3 [0] : vector<4x16x16xf32> to vector<16x16xf32>
    %17 = vector.shape_cast %16 : vector<16x16xf32> to vector<1x16x16xf32>
    %cst_4 = arith.constant 4.000000e+00 : f32
    %18 = vector.broadcast %cst_4 : f32 to vector<1x16x16xf32>
    %19 = arith.divf %17, %18 : vector<1x16x16xf32>
    %cst_5 = arith.constant 2.000000e+00 : f32
    %20 = arith.mulf %3, %cst_5 : f32
    %21 = vector.broadcast %19 : vector<1x16x16xf32> to vector<4x16x16xf32>
    %22 = arith.subf %15, %21 : vector<4x16x16xf32>
    %23 = vector.broadcast %20 : f32 to vector<4x16x16xf32>
    %24 = arith.mulf %23, %22 : vector<4x16x16xf32>
    %25 = vector.broadcast %19 : vector<1x16x16xf32> to vector<4x16x16xf32>
    %26 = arith.addf %24, %25 : vector<4x16x16xf32>
    %27 = vector.shape_cast %26 : vector<4x16x16xf32> to vector<1x4x16x16xf32>
    %cst_6 = arith.constant dense<0.000000e+00> : vector<1xf32>
    %28 = vector.multi_reduction <add>, %27, %cst_6 [1, 2, 3] : vector<1x4x16x16xf32> to vector<1xf32>
    %29 = vector.shape_cast %28 : vector<1xf32> to vector<1x1x1x1xf32>
    %30 = vector.extract %29[0, 0, 0, 0] : f32 from vector<1x1x1x1xf32>
    %cst_7 = arith.constant 1.024000e+03 : f32
    %31 = arith.divf %30, %cst_7 : f32
    %cst_8 = arith.constant 5.000000e-01 : f32
    %32 = arith.addf %5, %cst_8 : f32
    %33 = vector.broadcast %31 : f32 to vector<4x16x16xf32>
    %34 = arith.subf %26, %33 : vector<4x16x16xf32>
    %35 = vector.broadcast %32 : f32 to vector<4x16x16xf32>
    %36 = arith.mulf %35, %34 : vector<4x16x16xf32>
    %37 = vector.broadcast %31 : f32 to vector<4x16x16xf32>
    %38 = arith.addf %36, %37 : vector<4x16x16xf32>
    %cst_9 = arith.constant 0.000000e+00 : f32
    %39 = vector.broadcast %cst_9 : f32 to vector<4x8x16xf32>
    %c0_10 = arith.constant 0 : index
    %c0_11 = arith.constant 0 : index
    %c0_12 = arith.constant 0 : index
    %40 = vector.load %arg8[%c0_10, %c0_11, %c0_12] : memref<4x32x16xf32, #tpu.memory_space<vmem>>, vector<4x8x16xf32>
    tpu.vector_store %arg8[%c0_10, %c0_11, %c0_12], %39 {strides = array<i32>} : memref<4x32x16xf32, #tpu.memory_space<vmem>>, vector<4x8x16xf32>,
    %c0_13 = arith.constant 0 : index
    %c24 = arith.constant 24 : index
    %c0_14 = arith.constant 0 : index
    %41 = vector.load %arg8[%c0_13, %c24, %c0_14] : memref<4x32x16xf32, #tpu.memory_space<vmem>>, vector<4x8x16xf32>
    tpu.vector_store %arg8[%c0_13, %c24, %c0_14], %39 {strides = array<i32>} : memref<4x32x16xf32, #tpu.memory_space<vmem>>, vector<4x8x16xf32>,
    %c0_15 = arith.constant 0 : index
    %c8 = arith.constant 8 : index
    %c0_16 = arith.constant 0 : index
    %42 = vector.load %arg8[%c0_15, %c8, %c0_16] : memref<4x32x16xf32, #tpu.memory_space<vmem>>, vector<4x16x16xf32>
    tpu.vector_store %arg8[%c0_15, %c8, %c0_16], %38 {strides = array<i32>} : memref<4x32x16xf32, #tpu.memory_space<vmem>>, vector<4x16x16xf32>,
    %c8_i32 = arith.constant 8 : i32
    %43 = arith.addi %c8_i32, %7 : i32
    %c0_17 = arith.constant 0 : index
    %44 = arith.index_cast %43 : i32 to index
    %c0_18 = arith.constant 0 : index
    %45 = vector.load %arg8[%c0_17, %44, %c0_18] : memref<4x32x16xf32, #tpu.memory_space<vmem>>, vector<4x16x16xf32>
    %46 = tpu.iota {dimensions = array<i32: 0>} : vector<16x16xi32>
    %47 = tpu.iota {dimensions = array<i32: 1>} : vector<16x16xi32>
    %48 = vector.broadcast %9 : i32 to vector<16x16xi32>
    %49 = arith.addi %47, %48 : vector<16x16xi32>
    %50 = arith.cmpi eq, %46, %49 : vector<16x16xi32>
    %51 = arith.extui %50 : vector<16x16xi1> to vector<16x16xi32>
    %52 = arith.sitofp %51 : vector<16x16xi32> to vector<16x16xf32>
    %53 = vector.shape_cast %45 : vector<4x16x16xf32> to vector<64x16xf32>
    %cst_19 = arith.constant dense<0.000000e+00> : vector<64x16xf32>
    %54 = tpu.matmul %53, %52, %cst_19 {dimension_numbers = #tpu.dot_dimension_numbers<[1], [0], [0], [1], [0, 0, 1, 1], [], []>} : vector<64x16xf32>, vector<16x16xf32>, vector<64x16xf32> -> vector<64x16xf32>
    %55 = vector.shape_cast %54 : vector<64x16xf32> to vector<4x16x16xf32>
    %c0_20 = arith.constant 0 : index
    %c0_21 = arith.constant 0 : index
    %c0_22 = arith.constant 0 : index
    %c0_23 = arith.constant 0 : index
    %56 = vector.load %arg7[%c0_20, %c0_21, %c0_22, %c0_23] : memref<1x4x16x16xf32, #tpu.memory_space<vmem>>, vector<1x4x16x16xf32>
    %57 = vector.shape_cast %56 : vector<1x4x16x16xf32> to vector<4x16x16xf32>
    %58 = vector.shape_cast %55 : vector<4x16x16xf32> to vector<1x4x16x16xf32>
    tpu.vector_store %arg7[%c0_20, %c0_21, %c0_22, %c0_23], %58 {strides = array<i32>} : memref<1x4x16x16xf32, #tpu.memory_space<vmem>>, vector<1x4x16x16xf32>,
    return
  }
  func.func @transform_0(%arg0: i32) -> i32 {
    %c0_i32 = arith.constant 0 : i32
    %c0_i32_0 = arith.constant 0 : i32
    return %c0_i32 : i32
  }
  func.func @transform_1(%arg0: i32) -> i32 {
    %c0_i32 = arith.constant 0 : i32
    %c0_i32_0 = arith.constant 0 : i32
    return %c0_i32 : i32
  }
  func.func @transform_2(%arg0: i32) -> i32 {
    %c0_i32 = arith.constant 0 : i32
    %c0_i32_0 = arith.constant 0 : i32
    return %c0_i32 : i32
  }
  func.func @transform_3(%arg0: i32) -> i32 {
    %c0_i32 = arith.constant 0 : i32
    %c0_i32_0 = arith.constant 0 : i32
    return %c0_i32 : i32
  }
  func.func @transform_4(%arg0: i32) -> i32 {
    %c0_i32 = arith.constant 0 : i32
    %c0_i32_0 = arith.constant 0 : i32
    return %c0_i32 : i32
  }
  func.func @transform_5(%arg0: i32) -> (i32, i32, i32, i32) {
    %c0_i32 = arith.constant 0 : i32
    %c0_i32_0 = arith.constant 0 : i32
    %c0_i32_1 = arith.constant 0 : i32
    %c0_i32_2 = arith.constant 0 : i32
    return %arg0, %c0_i32, %c0_i32_0, %c0_i32_1 : i32, i32, i32, i32
  }
  func.func @transform_6(%arg0: i32) -> (i32, i32, i32, i32) {
    %c0_i32 = arith.constant 0 : i32
    %c0_i32_0 = arith.constant 0 : i32
    %c0_i32_1 = arith.constant 0 : i32
    %c0_i32_2 = arith.constant 0 : i32
    return %arg0, %c0_i32, %c0_i32_0, %c0_i32_1 : i32, i32, i32, i32
  }
}

</mosaic_0001>

<llo_original>
// kernel: tpu_custom_call.1
$region0: #{tpu_custom_call.1}
  #allocation0 [shape = 'u32[]', space=smem, size = 0x4, offset = 0x4, fixed_abs, tag = 'smem constant byte address 0x4 - core index']
  #allocation1 [shape = 'u32[144,128]{1,0:T(1,128)}', space=vmem, size = 0x12000, scoped, tag = 'internal scratch']
  #allocation2 [shape = 'f32[4,32,16]{2,1,0:T(8,128)}', space=vmem, size = 0x10000, scoped, tag = 'scratch operand']
  %s0 = inlined_call_operand.hbm [shape: f32[2], index: 0, kind: input, shape index: {}]
  %s1 = inlined_call_operand.vmem [shape: f32[2], index: 1, kind: input, shape index: {}]
  %s2 = inlined_call_operand.vmem [shape: f32[2], index: 2, kind: input, shape index: {}]
  %s3 = inlined_call_operand.vmem [shape: s32[2], index: 3, kind: input, shape index: {}]
  %s4 = inlined_call_operand.vmem [shape: s32[2], index: 4, kind: input, shape index: {}]
  %s5 = inlined_call_operand.hbm [shape: f32[2,4,16,16], index: 5, kind: input, shape index: {}]
  %s6 = inlined_call_operand.hbm [shape: f32[2,4,16,16], index: 6, kind: output, shape index: {}]
  %s7 = sld [smem:[#allocation0]]
  $region81: #{tpu_custom_call.1} parent=0
    _
  %s9 = ssub.s32 1, %s7
  %s10 = scalar_select 0, %s9, %s7
  $region1: #{tpu_custom_call.1} parent=0
    #allocation3 [shape = 'u8[512]{0}', space=smem, size = 0x200, scoped, tag = 'input window, operand 0, single buffered']
    #allocation4 [shape = 's32[2]{0}', space=sflag, size = 0x8, scoped, tag = 'scoped memory for tpu_custom_call.1']
    #allocation5 [shape = 's32[2]{0}', space=sflag, size = 0x8, scoped, tag = 'scoped memory for tpu_custom_call.1']
    #allocation6 [shape = 's32[2]{0}', space=sflag, size = 0x8, scoped, tag = 'scoped memory for tpu_custom_call.1']
    #allocation7 [shape = 's32[2]{0}', space=sflag, size = 0x8, scoped, tag = 'scoped memory for tpu_custom_call.1']
    #allocation8 [shape = 'u8[512]{0}', space=smem, size = 0x200, scoped, tag = 'input window, operand 1, single buffered']
    #allocation9 [shape = 'u8[512]{0}', space=smem, size = 0x200, scoped, tag = 'input window, operand 2, single buffered']
    #allocation10 [shape = 's32[1]{0}', space=sflag, size = 0x4, scoped, tag = 'scoped memory for tpu_custom_call.1']
    #allocation11 [shape = 'u8[512]{0}', space=smem, size = 0x200, scoped, tag = 'input window, operand 3, single buffered']
    #allocation12 [shape = 'u8[512]{0}', space=smem, size = 0x200, scoped, tag = 'input window, operand 4, single buffered']
    #allocation13 [shape = 's32[1]{0}', space=sflag, size = 0x4, scoped, tag = 'scoped memory for tpu_custom_call.1']
    #allocation14 [shape = 'u8[65536]{0}', space=vmem, size = 0x10000, scoped, tag = 'input window, operand 5']
    #allocation15 [shape = 'u8[65536]{0}', space=vmem, size = 0x10000, scoped, tag = 'output window, operand 0']
    %11 = vsyncpa [#allocation6], 0
    %12 = vsyncpa [#allocation7], 0
    %13 = vsyncpa [#allocation10], 0
    %14 = vsyncpa [#allocation13], 0
    %15 = vsyncpa [#allocation4], 0
    %s16 = scalar_lea.sflag [#allocation4], 1
    %17 = vsyncpa %s16, 0
    %18 = vsyncpa [#allocation5], 0
    %s19 = scalar_lea.sflag [#allocation5], 1
    %20 = vsyncpa %s19, 0
    loop: start=0, step=1, limit=4
    $region2: #{tpu_custom_call.1} parent=1 // loop_pre_header
      _
    $region3: #{tpu_custom_call.1} parent=1 // loop_header
      %s22 = sphi 0, %s26
      %p23 = scmp.ge.s32.totalorder %s22, 4
      %s30 = sphi 0, %s30
      %s32 = sphi 0, %s30
      %s33 = sphi 0, %s32
      %s47 = sphi 0, %s33
      %s51 = sphi 0, %s51
      %s53 = sphi 0, %s51
      %s54 = sphi 0, %s53
      %s68 = sphi 0, %s54
      %s72 = sphi 0, %s72
      %s74 = sphi 0, %s72
      %s75 = sphi 0, %s74
      %s89 = sphi 0, %s75
      %s93 = sphi 0, %s93
      %s95 = sphi 0, %s93
      %s96 = sphi 0, %s95
      %s110 = sphi 0, %s96
      %s114 = sphi 0, %s114
      %s116 = sphi 0, %s114
      %s117 = sphi 0, %s116
      %s131 = sphi 0, %s117
      %s137 = sphi 0, %s139
      %s140 = sphi 0, %s137
      %s141 = sphi 0, %s140
      %s157 = sphi 0, %s141
      %s163 = sphi 0, %s165
      %s166 = sphi 0, %s163
      %s167 = sphi 0, %s166
      %s183 = sphi 0, %s167
    $region4: #{tpu_custom_call.1} parent=1 // loop_header_branch
      %25 = sbr.rel (%p23) target = $region8
    $region5: #{tpu_custom_call.1} parent=1 // loop_body
      %s27 = ssub.s32 %s22, 1
      %s28 = ssub.s32 %s22, 2
      %s29 = sadd.s32 %s22, 1
      %s31 = sadd.s32 %s30, 1
      %p34 = scmp.eq.s32.totalorder %s22, 1
      %p35 = scmp.ne.s32.totalorder %s30, %s32
      %p36 = scmp.eq.s32.totalorder %s22, 0
      %p37 = por %p35, %p36
      %p38 = scmp.ne.s32.totalorder %s30, %s32
      %p39 = scmp.eq.s32.totalorder %s27, 1
      %p40 = por %p38, %p39
      %p41 = scmp.ne.s32.totalorder %s32, %s33
      %p42 = scmp.eq.s32.totalorder %s27, 0
      %p43 = por %p41, %p42
      %p44 = scmp.ne.s32.totalorder %s32, %s33
      %p45 = scmp.eq.s32.totalorder %s28, 1
      %p46 = por %p44, %p45
      %p48 = scmp.ne.s32.totalorder %s33, %s47
      %p49 = scmp.eq.s32.totalorder %s28, 0
      %p50 = por %p48, %p49
      %s52 = sadd.s32 %s51, 1
      %p55 = scmp.eq.s32.totalorder %s22, 1
      %p56 = scmp.ne.s32.totalorder %s51, %s53
      %p57 = scmp.eq.s32.totalorder %s22, 0
      %p58 = por %p56, %p57
      %p59 = scmp.ne.s32.totalorder %s51, %s53
      %p60 = scmp.eq.s32.totalorder %s27, 1
      %p61 = por %p59, %p60
      %p62 = scmp.ne.s32.totalorder %s53, %s54
      %p63 = scmp.eq.s32.totalorder %s27, 0
      %p64 = por %p62, %p63
      %p65 = scmp.ne.s32.totalorder %s53, %s54
      %p66 = scmp.eq.s32.totalorder %s28, 1
      %p67 = por %p65, %p66
      %p69 = scmp.ne.s32.totalorder %s54, %s68
      %p70 = scmp.eq.s32.totalorder %s28, 0
      %p71 = por %p69, %p70
      %s73 = sadd.s32 %s72, 1
      %p76 = scmp.eq.s32.totalorder %s22, 1
      %p77 = scmp.ne.s32.totalorder %s72, %s74
      %p78 = scmp.eq.s32.totalorder %s22, 0
      %p79 = por %p77, %p78
      %p80 = scmp.ne.s32.totalorder %s72, %s74
      %p81 = scmp.eq.s32.totalorder %s27, 1
      %p82 = por %p80, %p81
      %p83 = scmp.ne.s32.totalorder %s74, %s75
      %p84 = scmp.eq.s32.totalorder %s27, 0
      %p85 = por %p83, %p84
      %p86 = scmp.ne.s32.totalorder %s74, %s75
      %p87 = scmp.eq.s32.totalorder %s28, 1
      %p88 = por %p86, %p87
      %p90 = scmp.ne.s32.totalorder %s75, %s89
      %p91 = scmp.eq.s32.totalorder %s28, 0
      %p92 = por %p90, %p91
      %s94 = sadd.s32 %s93, 1
      %p97 = scmp.eq.s32.totalorder %s22, 1
      %p98 = scmp.ne.s32.totalorder %s93, %s95
      %p99 = scmp.eq.s32.totalorder %s22, 0
      %p100 = por %p98, %p99
      %p101 = scmp.ne.s32.totalorder %s93, %s95
      %p102 = scmp.eq.s32.totalorder %s27, 1
      %p103 = por %p101, %p102
      %p104 = scmp.ne.s32.totalorder %s95, %s96
      %p105 = scmp.eq.s32.totalorder %s27, 0
      %p106 = por %p104, %p105
      %p107 = scmp.ne.s32.totalorder %s95, %s96
      %p108 = scmp.eq.s32.totalorder %s28, 1
      %p109 = por %p107, %p108
      %p111 = scmp.ne.s32.totalorder %s96, %s110
      %p112 = scmp.eq.s32.totalorder %s28, 0
      %p113 = por %p111, %p112
      %s115 = sadd.s32 %s114, 1
      %p118 = scmp.eq.s32.totalorder %s22, 1
      %p119 = scmp.ne.s32.totalorder %s114, %s116
      %p120 = scmp.eq.s32.totalorder %s22, 0
      %p121 = por %p119, %p120
      %p122 = scmp.ne.s32.totalorder %s114, %s116
      %p123 = scmp.eq.s32.totalorder %s27, 1
      %p124 = por %p122, %p123
      %p125 = scmp.ne.s32.totalorder %s116, %s117
      %p126 = scmp.eq.s32.totalorder %s27, 0
      %p127 = por %p125, %p126
      %p128 = scmp.ne.s32.totalorder %s116, %s117
      %p129 = scmp.eq.s32.totalorder %s28, 1
      %p130 = por %p128, %p129
      %p132 = scmp.ne.s32.totalorder %s117, %s131
      %p133 = scmp.eq.s32.totalorder %s28, 0
      %p134 = por %p132, %p133
      %s135 = ssub.s32 %s22, %s29
      %p136 = scmp.eq.s32.totalorder %s135, 0
      %s138 = sadd.s32 %s137, 1
      %s139 = scalar_select %p136, %s137, %s138
      %p142 = pneg %p136
      %p143 = scmp.eq.s32.totalorder %s22, 1
      %p144 = por %p142, %p143
      %p145 = scmp.ne.s32.totalorder %s137, %s140
      %p146 = scmp.eq.s32.totalorder %s22, 0
      %p147 = por %p145, %p146
      %p148 = scmp.ne.s32.totalorder %s137, %s140
      %p149 = scmp.eq.s32.totalorder %s27, 1
      %p150 = por %p148, %p149
      %p151 = scmp.ne.s32.totalorder %s140, %s141
      %p152 = scmp.eq.s32.totalorder %s27, 0
      %p153 = por %p151, %p152
      %p154 = scmp.ne.s32.totalorder %s140, %s141
      %p155 = scmp.eq.s32.totalorder %s28, 1
      %p156 = por %p154, %p155
      %p158 = scmp.ne.s32.totalorder %s141, %s157
      %p159 = scmp.eq.s32.totalorder %s28, 0
      %p160 = por %p158, %p159
      %s161 = ssub.s32 %s22, %s29
      %p162 = scmp.eq.s32.totalorder %s161, 0
      %s164 = sadd.s32 %s163, 1
      %s165 = scalar_select %p162, %s163, %s164
      %p168 = pneg %p162
      %p169 = scmp.eq.s32.totalorder %s22, 1
      %p170 = por %p168, %p169
      %p171 = scmp.ne.s32.totalorder %s163, %s166
      %p172 = scmp.eq.s32.totalorder %s22, 0
      %p173 = por %p171, %p172
      %p174 = scmp.ne.s32.totalorder %s163, %s166
      %p175 = scmp.eq.s32.totalorder %s27, 1
      %p176 = por %p174, %p175
      %p177 = scmp.ne.s32.totalorder %s166, %s167
      %p178 = scmp.eq.s32.totalorder %s27, 0
      %p179 = por %p177, %p178
      %p180 = scmp.ne.s32.totalorder %s166, %s167
      %p181 = scmp.eq.s32.totalorder %s28, 1
      %p182 = por %p180, %p181
      %p184 = scmp.ne.s32.totalorder %s167, %s183
      %p185 = scmp.eq.s32.totalorder %s28, 0
      %p186 = por %p184, %p185
      %p187 = scmp.le.s32.totalorder 1, %s22
      %p188 = scmp.lt.s32.totalorder %s22, 3
      %p189 = pnand %p187, %p188
      %p190 = pneg %p189
      // Predicated region
      $region9: #{tpu_custom_call.1} parent=5 // pred_check
        _
      $region10: #{tpu_custom_call.1} parent=5 // pred_check_branch
        %192 = sbr.rel (%p189) target = $region12
      $region11: #{tpu_custom_call.1} parent=5 // pred_region
        %s193 = ssub.s32 %s22, 1
        // Predicated region
        $region13: #{tpu_custom_call.1} parent=11 // pred_check
          %p194 = pneg %p43
        $region14: #{tpu_custom_call.1} parent=11 // pred_check_branch
          %196 = sbr.rel (%p194) target = $region16
        $region15: #{tpu_custom_call.1} parent=11 // pred_region
          %s198 = ssub.s32 16, 16
          %199 = vsyncadd [#allocation6], %s198
          %202 = dma.hbm_to_smem %s0, 16, [#allocation3], [#allocation6]
        $region16: #{tpu_custom_call.1} parent=11 // pred_fallthru
          _
        // Predicated region
        $region17: #{tpu_custom_call.1} parent=11 // pred_check
          %p203 = pneg %p64
        $region18: #{tpu_custom_call.1} parent=11 // pred_check_branch
          %205 = sbr.rel (%p203) target = $region20
        $region19: #{tpu_custom_call.1} parent=11 // pred_region
          %s207 = ssub.s32 16, 16
          %208 = vsyncadd [#allocation7], %s207
          %s210 = sshll.u32 %s1, 4
          %s211 = int_to_ptr.vmem [resolvable:$true] %s210
          %213 = dma.vmem_to_smem %s211, 16, [#allocation8], [#allocation7]
        $region20: #{tpu_custom_call.1} parent=11 // pred_fallthru
          _
        // Predicated region
        $region21: #{tpu_custom_call.1} parent=11 // pred_check
          %p214 = pneg %p85
        $region22: #{tpu_custom_call.1} parent=11 // pred_check_branch
          %216 = sbr.rel (%p214) target = $region24
        $region23: #{tpu_custom_call.1} parent=11 // pred_region
          %s218 = ssub.s32 16, 16
          %219 = vsyncadd [#allocation10], %s218
          %s221 = sshll.u32 %s2, 4
          %s222 = int_to_ptr.vmem [resolvable:$true] %s221
          %224 = dma.vmem_to_smem %s222, 16, [#allocation9], [#allocation10]
        $region24: #{tpu_custom_call.1} parent=11 // pred_fallthru
          _
        // Predicated region
        $region25: #{tpu_custom_call.1} parent=11 // pred_check
          %p225 = pneg %p106
        $region26: #{tpu_custom_call.1} parent=11 // pred_check_branch
          %227 = sbr.rel (%p225) target = $region28
        $region27: #{tpu_custom_call.1} parent=11 // pred_region
          %s229 = ssub.s32 16, 16
          %230 = vsyncadd [#allocation10], %s229
          %s232 = sshll.u32 %s3, 4
          %s233 = int_to_ptr.vmem [resolvable:$true] %s232
          %235 = dma.vmem_to_smem %s233, 16, [#allocation11], [#allocation10]
        $region28: #{tpu_custom_call.1} parent=11 // pred_fallthru
          _
        // Predicated region
        $region29: #{tpu_custom_call.1} parent=11 // pred_check
          %p236 = pneg %p127
        $region30: #{tpu_custom_call.1} parent=11 // pred_check_branch
          %238 = sbr.rel (%p236) target = $region32
        $region31: #{tpu_custom_call.1} parent=11 // pred_region
          %s240 = ssub.s32 16, 16
          %241 = vsyncadd [#allocation13], %s240
          %s243 = sshll.u32 %s4, 4
          %s244 = int_to_ptr.vmem [resolvable:$true] %s243
          %246 = dma.vmem_to_smem %s244, 16, [#allocation12], [#allocation13]
        $region32: #{tpu_custom_call.1} parent=11 // pred_fallthru
          _
      $region12: #{tpu_custom_call.1} parent=5 // pred_fallthru
        _
      %p247 = scmp.lt.s32.totalorder %s22, 2
      // Predicated region
      $region33: #{tpu_custom_call.1} parent=5 // pred_check
        %p248 = pneg %p247
      $region34: #{tpu_custom_call.1} parent=5 // pred_check_branch
        %250 = sbr.rel (%p248) target = $region36
      $region35: #{tpu_custom_call.1} parent=5 // pred_region
        // Predicated region
        $region37: #{tpu_custom_call.1} parent=35 // pred_check
          %p251 = pneg %p147
        $region38: #{tpu_custom_call.1} parent=35 // pred_check_branch
          %253 = sbr.rel (%p251) target = $region40
        $region39: #{tpu_custom_call.1} parent=35 // pred_region
          %s254 = sand.u32 %s137, 1
          %s255 = scalar_lea.sflag [#allocation4], %s254
          %s256 = sand.u32 %s137, 1
          %s257 = smul.addr %s256, 64
          %s258 = scalar_lea.vmem [#allocation14], %s257
          %s260 = ssub.s32 1024, 1024
          %261 = vsyncadd %s255, %s260
          %s262 = smul.addr %s22, 8
          %s263 = smul.addr %s262, 128
          %s264 = scalar_lea.hbm %s5, %s263
          %s265 = sshll.u32 %s258, 4
          %s266 = int_to_ptr.vmem [resolvable:$true] %s265
          %271 = dma.hbm_to_vmem [thread:$0]  %s264, 1024, %s266, %s255, 128, 128, 8
        $region40: #{tpu_custom_call.1} parent=35 // pred_fallthru
          _
      $region36: #{tpu_custom_call.1} parent=5 // pred_fallthru
        _
      %p272 = scmp.le.s32.totalorder 1, %s22
      %p273 = scmp.lt.s32.totalorder %s22, 3
      %p274 = pnand %p272, %p273
      %p275 = pneg %p274
      // Predicated region
      $region41: #{tpu_custom_call.1} parent=5 // pred_check
        _
      $region42: #{tpu_custom_call.1} parent=5 // pred_check_branch
        %277 = sbr.rel (%p274) target = $region44
      $region43: #{tpu_custom_call.1} parent=5 // pred_region
        %s278 = ssub.s32 %s22, 1
        // Predicated region
        $region45: #{tpu_custom_call.1} parent=43 // pred_check
          %p279 = pneg %p43
        $region46: #{tpu_custom_call.1} parent=43 // pred_check_branch
          %281 = sbr.rel (%p279) target = $region48
        $region47: #{tpu_custom_call.1} parent=43 // pred_region
          %282 = dma.done [#allocation6], 16
        $region48: #{tpu_custom_call.1} parent=43 // pred_fallthru
          _
        // Predicated region
        $region49: #{tpu_custom_call.1} parent=43 // pred_check
          %p283 = pneg %p64
        $region50: #{tpu_custom_call.1} parent=43 // pred_check_branch
          %285 = sbr.rel (%p283) target = $region52
        $region51: #{tpu_custom_call.1} parent=43 // pred_region
          %286 = dma.done [#allocation7], 16
        $region52: #{tpu_custom_call.1} parent=43 // pred_fallthru
          _
        // Predicated region
        $region53: #{tpu_custom_call.1} parent=43 // pred_check
          %p287 = pneg %p85
        $region54: #{tpu_custom_call.1} parent=43 // pred_check_branch
          %289 = sbr.rel (%p287) target = $region56
        $region55: #{tpu_custom_call.1} parent=43 // pred_region
          %290 = dma.done [#allocation10], 16
        $region56: #{tpu_custom_call.1} parent=43 // pred_fallthru
          _
        // Predicated region
        $region57: #{tpu_custom_call.1} parent=43 // pred_check
          %p291 = pneg %p106
        $region58: #{tpu_custom_call.1} parent=43 // pred_check_branch
          %293 = sbr.rel (%p291) target = $region60
        $region59: #{tpu_custom_call.1} parent=43 // pred_region
          %294 = dma.done [#allocation10], 16
        $region60: #{tpu_custom_call.1} parent=43 // pred_fallthru
          _
        // Predicated region
        $region61: #{tpu_custom_call.1} parent=43 // pred_check
          %p295 = pneg %p127
        $region62: #{tpu_custom_call.1} parent=43 // pred_check_branch
          %297 = sbr.rel (%p295) target = $region64
        $region63: #{tpu_custom_call.1} parent=43 // pred_region
          %298 = dma.done [#allocation13], 16
        $region64: #{tpu_custom_call.1} parent=43 // pred_fallthru
          _
        %s299 = sand.u32 %s140, 1
        %s300 = scalar_lea.sflag [#allocation4], %s299
        %s301 = sand.u32 %s140, 1
        %s302 = smul.addr %s301, 64
        %s303 = scalar_lea.vmem [#allocation14], %s302
        // Predicated region
        $region65: #{tpu_custom_call.1} parent=43 // pred_check
          %p304 = pneg %p153
        $region66: #{tpu_custom_call.1} parent=43 // pred_check_branch
          %306 = sbr.rel (%p304) target = $region68
        $region67: #{tpu_custom_call.1} parent=43 // pred_region
          %307 = dma.done %s300, 1024
        $region68: #{tpu_custom_call.1} parent=43 // pred_fallthru
          _
        %308 = sfence
        %p309 = pneg %p43
        %p310 = pneg %p40
        %p311 = pneg %p64
        %p312 = pneg %p61
        %p313 = pneg %p85
        %p314 = pneg %p82
        %p315 = pneg %p106
        %p316 = pneg %p103
        %p317 = pneg %p127
        %p318 = pneg %p124
        %s319 = sand.u32 %s140, 1
        %s320 = scalar_lea.sflag [#allocation4], %s319
        %s321 = sand.u32 %s140, 1
        %s322 = smul.addr %s321, 64
        %s323 = scalar_lea.vmem [#allocation14], %s322
        %p324 = pneg %p153
        %p325 = pneg %p150
        %p326 = pneg %p179
        %p327 = pneg %p176
        %s328 = sand.u32 %s166, 1
        %s329 = scalar_lea.sflag [#allocation5], %s328
        %s330 = sand.u32 %s166, 1
        %s331 = smul.addr %s330, 64
        %s332 = scalar_lea.vmem [#allocation15], %s331
        %s333 = sld [smem:[#allocation3 + %s27]]
        %s334 = sld [smem:[#allocation8 + %s27]]
        %s335 = sld [smem:[#allocation9 + %s27]]
        %s336 = sld [smem:[#allocation11 + %s27]]
        %s337 = sld [smem:[#allocation12 + %s27]]
        %v338 = vld [vmem:[%s303] sm:$0xff]
        %v339 = vld [vmem:[%s303 + $0x8] sm:$0xff]
        %v340 = vld [vmem:[%s303 + $0x10] sm:$0xff]
        %v341 = vld [vmem:[%s303 + $0x18] sm:$0xff]
        %v342 = vld [vmem:[%s303 + $0x20] sm:$0xff]
        %v343 = vld [vmem:[%s303 + $0x28] sm:$0xff]
        %v344 = vld [vmem:[%s303 + $0x30] sm:$0xff]
        %v345 = vld [vmem:[%s303 + $0x38] sm:$0xff]
        %v346 = vstv %s333
        %v347 = vadd.f32 %v338, %v346
        %v348 = vadd.f32 %v339, %v346
        %v349 = vadd.f32 %v340, %v346
        %v350 = vadd.f32 %v341, %v346
        %v351 = vadd.f32 %v342, %v346
        %v352 = vadd.f32 %v343, %v346
        %v353 = vadd.f32 %v344, %v346
        %v354 = vadd.f32 %v345, %v346
        %v355 = vsub.f32 %v347, 0.5
        %v356 = vsub.f32 %v348, 0.5
        %v357 = vsub.f32 %v349, 0.5
        %v358 = vsub.f32 %v350, 0.5
        %v359 = vsub.f32 %v351, 0.5
        %v360 = vsub.f32 %v352, 0.5
        %v361 = vsub.f32 %v353, 0.5
        %v362 = vsub.f32 %v354, 0.5
        %vm363 = vcmask 130048
        %v364 = vsel %vm363, %v355, 0.0
        %v365 = vsel %vm363, %v357, 0.0
        %v366 = vadd.f32 %v364, %v365
        %v367 = vsel %vm363, %v359, 0.0
        %v368 = vadd.f32 %v366, %v367
        %v369 = vsel %vm363, %v361, 0.0
        %v370 = vadd.f32 %v368, %v369
        %v371 = vsel %vm363, %v356, 0.0
        %v372 = vsel %vm363, %v358, 0.0
        %v373 = vadd.f32 %v371, %v372
        %v374 = vsel %vm363, %v360, 0.0
        %v375 = vadd.f32 %v373, %v374
        %v376 = vsel %vm363, %v362, 0.0
        %v377 = vadd.f32 %v375, %v376
        %v378 = vrcp.pop 4.0
        %v379 = vmul.f32 %v370, %v378
        %v380 = vmul.f32 %v377, %v378
        %s381 = smul.f32 %s334, 2.0
        %v382 = vsub.f32 %v355, %v379
        %v383 = vsub.f32 %v356, %v380
        %v384 = vsub.f32 %v357, %v379
        %v385 = vsub.f32 %v358, %v380
        %v386 = vsub.f32 %v359, %v379
        %v387 = vsub.f32 %v360, %v380
        %v388 = vsub.f32 %v361, %v379
        %v389 = vsub.f32 %v362, %v380
        %v390 = vstv %s381
        %v391 = vmul.f32 %v390, %v382
        %v392 = vmul.f32 %v390, %v383
        %v393 = vmul.f32 %v390, %v384
        %v394 = vmul.f32 %v390, %v385
        %v395 = vmul.f32 %v390, %v386
        %v396 = vmul.f32 %v390, %v387
        %v397 = vmul.f32 %v390, %v388
        %v398 = vmul.f32 %v390, %v389
        %v399 = vadd.f32 %v391, %v379
        %v400 = vadd.f32 %v392, %v380
        %v401 = vadd.f32 %v393, %v379
        %v402 = vadd.f32 %v394, %v380
        %v403 = vadd.f32 %v395, %v379
        %v404 = vadd.f32 %v396, %v380
        %v405 = vadd.f32 %v397, %v379
        %v406 = vadd.f32 %v398, %v380
        %v407 = vsel %vm363, %v399, 0.0
        %v408 = vsel %vm363, %v400, 0.0
        %v409 = vadd.f32 %v407, %v408
        %v410 = vsel %vm363, %v401, 0.0
        %v411 = vadd.f32 %v409, %v410
        %v412 = vsel %vm363, %v402, 0.0
        %v413 = vadd.f32 %v411, %v412
        %v414 = vsel %vm363, %v403, 0.0
        %v415 = vadd.f32 %v413, %v414
        %v416 = vsel %vm363, %v404, 0.0
        %v417 = vadd.f32 %v415, %v416
        %v418 = vsel %vm363, %v405, 0.0
        %v419 = vadd.f32 %v417, %v418
        %v420 = vsel %vm363, %v406, 0.0
        %v421 = vadd.f32 %v419, %v420
        %422 = vadd.xlane.f32.xlu0 %v421
        %v423 = vpop.xlane.xlu0 %422
        %v424 = vrot.slane %v423, 4
        %v425 = vadd.f32 %v423, %v424
        %v426 = vrot.slane %v425, 2
        %v427 = vadd.f32 %v425, %v426
        %v428 = vrot.slane %v427, 1
        %v429 = vadd.f32 %v427, %v428
        %s430 = vtos %v429
        %v431 = vrcp.pop 1024.0
        %s432 = vtos %v431
        %s433 = smul.f32 %s430, %s432
        %s434 = sadd.f32 %s335, 0.5
        %v435 = vstv %s433
        %v436 = vsub.f32 %v399, %v435
        %v437 = vsub.f32 %v400, %v435
        %v438 = vsub.f32 %v401, %v435
        %v439 = vsub.f32 %v402, %v435
        %v440 = vsub.f32 %v403, %v435
        %v441 = vsub.f32 %v404, %v435
        %v442 = vsub.f32 %v405, %v435
        %v443 = vsub.f32 %v406, %v435
        %v444 = vstv %s434
        %v445 = vmul.f32 %v444, %v436
        %v446 = vmul.f32 %v444, %v437
        %v447 = vmul.f32 %v444, %v438
        %v448 = vmul.f32 %v444, %v439
        %v449 = vmul.f32 %v444, %v440
        %v450 = vmul.f32 %v444, %v441
        %v451 = vmul.f32 %v444, %v442
        %v452 = vmul.f32 %v444, %v443
        %v453 = vadd.f32 %v445, %v435
        %v454 = vadd.f32 %v446, %v435
        %v455 = vadd.f32 %v447, %v435
        %v456 = vadd.f32 %v448, %v435
        %v457 = vadd.f32 %v449, %v435
        %v458 = vadd.f32 %v450, %v435
        %v459 = vadd.f32 %v451, %v435
        %v460 = vadd.f32 %v452, %v435
        %461 = vst.msk [vmem:[#allocation2] sm:$0xff] %vm363, 0.0
        %462 = vst.msk [vmem:[#allocation2 + $0x20] sm:$0xff] %vm363, 0.0
        %463 = vst.msk [vmem:[#allocation2 + $0x40] sm:$0xff] %vm363, 0.0
        %464 = vst.msk [vmem:[#allocation2 + $0x60] sm:$0xff] %vm363, 0.0
        %465 = vst.msk [vmem:[#allocation2 + $0x18] sm:$0xff] %vm363, 0.0
        %466 = vst.msk [vmem:[#allocation2 + $0x38] sm:$0xff] %vm363, 0.0
        %467 = vst.msk [vmem:[#allocation2 + $0x58] sm:$0xff] %vm363, 0.0
        %468 = vst.msk [vmem:[#allocation2 + $0x78] sm:$0xff] %vm363, 0.0
        %469 = vst.msk [vmem:[#allocation2 + $0x8] sm:$0xff] %vm363, %v453
        %470 = vst.msk [vmem:[#allocation2 + $0x10] sm:$0xff] %vm363, %v454
        %471 = vst.msk [vmem:[#allocation2 + $0x28] sm:$0xff] %vm363, %v455
        %472 = vst.msk [vmem:[#allocation2 + $0x30] sm:$0xff] %vm363, %v456
        %473 = vst.msk [vmem:[#allocation2 + $0x48] sm:$0xff] %vm363, %v457
        %474 = vst.msk [vmem:[#allocation2 + $0x50] sm:$0xff] %vm363, %v458
        %475 = vst.msk [vmem:[#allocation2 + $0x68] sm:$0xff] %vm363, %v459
        %476 = vst.msk [vmem:[#allocation2 + $0x70] sm:$0xff] %vm363, %v460
        %s477 = sadd.s32 %s336, 8
        %s478 = scalar_lea.vmem [#allocation2], %s477
        %v479 = vld [vmem:[%s478] sm:$0xff]
        %v480 = vld [vmem:[%s478 + $0x8] sm:$0xff]
        %v481 = vld [vmem:[%s478 + $0x20] sm:$0xff]
        %v482 = vld [vmem:[%s478 + $0x28] sm:$0xff]
        %v483 = vld [vmem:[%s478 + $0x40] sm:$0xff]
        %v484 = vld [vmem:[%s478 + $0x48] sm:$0xff]
        %v485 = vld [vmem:[%s478 + $0x60] sm:$0xff]
        %v486 = vld [vmem:[%s478 + $0x68] sm:$0xff]
        %v487 = vlaneseq
        %v488 = vshrl.u32 %v487, 7
        %v489 = vadd.s32 %v488, 8
        %v490 = vlaneseq
        %v491 = vand.u32 %v490, 127
        %v492 = vstv %s337
        %v493 = vadd.s32 %v491, %v492
        %vm494 = vcmp.eq.s32.totalorder %v488, %v493
        %vm495 = vcmp.eq.s32.totalorder %v489, %v493
        %v496 = vsel %vm494, 1, 0
        %v497 = vsel %vm495, 1, 0
        %v498 = vcvt.s32.f32 %v496
        %v499 = vcvt.s32.f32 %v497
        %v501 = vsel %vm363, %v479, 0
        %v504 = vsel %vm363, %v480, 0
        %v507 = vsel %vm363, %v481, 0
        %v510 = vsel %vm363, %v482, 0
        %v513 = vsel %vm363, %v483, 0
        %v516 = vsel %vm363, %v484, 0
        %v519 = vsel %vm363, %v485, 0
        %v522 = vsel %vm363, %v486, 0
        %524 = vmatprep.subr.mxu0 0.0
        %525 = vmatpush1.msra.mxu0 0.0
        %526 = vmatprep.subr.mxu0 0.0
        %527 = vmatpush1.msra.mxu0 0.0
        %528 = vmatprep.subr.mxu0 0.0
        %529 = vmatpush1.msra.mxu0 0.0
        %530 = vmatprep.subr.mxu0 0.0
        %531 = vmatpush1.msra.mxu0 0.0
        %532 = vmatprep.subr.mxu0 0.0
        %533 = vmatpush1.msra.mxu0 0.0
        %534 = vmatprep.subr.mxu0 0.0
        %535 = vmatpush1.msra.mxu0 0.0
        %536 = vmatprep.subr.mxu0 0.0
        %537 = vmatpush1.msra.mxu0 0.0
        %538 = vmatprep.subr.mxu0 0.0
        %539 = vmatpush1.msra.mxu0 0.0
        %540 = vmatprep.subr.mxu0 0.0
        %541 = vmatpush1.msra.mxu0 0.0
        %542 = vmatprep.subr.mxu0 0.0
        %543 = vmatpush1.msra.mxu0 0.0
        %544 = vmatprep.subr.mxu0 0.0
        %545 = vmatpush1.msra.mxu0 0.0
        %546 = vmatprep.subr.mxu0 0.0
        %547 = vmatpush1.msra.mxu0 0.0
        %548 = vmatprep.subr.mxu0 0.0
        %549 = vmatpush1.msra.mxu0 0.0
        %550 = vmatprep.subr.mxu0 0.0
        %551 = vmatpush1.msra.mxu0 0.0
        %552 = vmatprep.subr.mxu0 0.0
        %553 = vmatpush1.msra.mxu0 %v499
        %554 = vmatprep.subr.mxu0 0.0
        %555 = vmatpush1.msra.mxu0 %v498
        %556 = vmatprep.subr.mxu0 0.0
        %557 = vmatpush2.msra.mxu0 0.0
        %558 = vmatprep.subr.mxu0 0.0
        %559 = vmatpush2.msra.mxu0 0.0
        %560 = vmatprep.subr.mxu0 0.0
        %561 = vmatpush2.msra.mxu0 0.0
        %562 = vmatprep.subr.mxu0 0.0
        %563 = vmatpush2.msra.mxu0 0.0
        %564 = vmatprep.subr.mxu0 0.0
        %565 = vmatpush2.msra.mxu0 0.0
        %566 = vmatprep.subr.mxu0 0.0
        %567 = vmatpush2.msra.mxu0 0.0
        %568 = vmatprep.subr.mxu0 0.0
        %569 = vmatpush2.msra.mxu0 0.0
        %570 = vmatprep.subr.mxu0 0.0
        %571 = vmatpush2.msra.mxu0 0.0
        %572 = vmatprep.subr.mxu0 0.0
        %573 = vmatpush2.msra.mxu0 0.0
        %574 = vmatprep.subr.mxu0 0.0
        %575 = vmatpush2.msra.mxu0 0.0
        %576 = vmatprep.subr.mxu0 0.0
        %577 = vmatpush2.msra.mxu0 0.0
        %578 = vmatprep.subr.mxu0 0.0
        %579 = vmatpush2.msra.mxu0 0.0
        %580 = vmatprep.subr.mxu0 0.0
        %581 = vmatpush2.msra.mxu0 0.0
        %582 = vmatprep.subr.mxu0 0.0
        %583 = vmatpush2.msra.mxu0 0.0
        %584 = vmatprep.subr.mxu0 0.0
        %585 = vmatpush2.msra.mxu0 0.0
        %586 = vmatprep.subr.mxu0 0.0
        %587 = vmatpush2.msra.mxu0 0.0
        %588 = vmatprep.mubr.f32.mxu0 0.0
        %589 = vmatmul.mubr.f32.gmra.mxu0 %v501
        %v590 = vpop.f32.mrf.mxu0
        %v591 = vadd.f32 0.0, %v590
        %v592 = vpop.f32.mrf.mxu0
        %593 = vmatprep.mubr.f32.mxu0 0.0
        %594 = vmatmul.mubr.f32.gmra.mxu0 %v504
        %v595 = vpop.f32.mrf.mxu0
        %v596 = vadd.f32 0.0, %v595
        %v597 = vpop.f32.mrf.mxu0
        %598 = vmatprep.mubr.f32.mxu0 0.0
        %599 = vmatmul.mubr.f32.gmra.mxu0 %v507
        %v600 = vpop.f32.mrf.mxu0
        %v601 = vadd.f32 0.0, %v600
        %v602 = vpop.f32.mrf.mxu0
        %603 = vmatprep.mubr.f32.mxu0 0.0
        %604 = vmatmul.mubr.f32.gmra.mxu0 %v510
        %v605 = vpop.f32.mrf.mxu0
        %v606 = vadd.f32 0.0, %v605
        %v607 = vpop.f32.mrf.mxu0
        %608 = vmatprep.mubr.f32.mxu0 0.0
        %609 = vmatmul.mubr.f32.gmra.mxu0 %v513
        %v610 = vpop.f32.mrf.mxu0
        %v611 = vadd.f32 0.0, %v610
        %v612 = vpop.f32.mrf.mxu0
        %613 = vmatprep.mubr.f32.mxu0 0.0
        %614 = vmatmul.mubr.f32.gmra.mxu0 %v516
        %v615 = vpop.f32.mrf.mxu0
        %v616 = vadd.f32 0.0, %v615
        %v617 = vpop.f32.mrf.mxu0
        %618 = vmatprep.mubr.f32.mxu0 0.0
        %619 = vmatmul.mubr.f32.gmra.mxu0 %v519
        %v620 = vpop.f32.mrf.mxu0
        %v621 = vadd.f32 0.0, %v620
        %v622 = vpop.f32.mrf.mxu0
        %623 = vmatprep.mubr.f32.mxu0 0.0
        %624 = vmatmul.mubr.f32.gmra.mxu0 %v522
        %v625 = vpop.f32.mrf.mxu0
        %v626 = vadd.f32 0.0, %v625
        %v627 = vpop.f32.mrf.mxu0
        %628 = vdwg.mxu0
        %629 = vst.msk [vmem:[%s332] sm:$0xff] %vm363, %v591
        %630 = vst.msk [vmem:[%s332 + $0x8] sm:$0xff] %vm363, %v596
        %631 = vst.msk [vmem:[%s332 + $0x10] sm:$0xff] %vm363, %v601
        %632 = vst.msk [vmem:[%s332 + $0x18] sm:$0xff] %vm363, %v606
        %633 = vst.msk [vmem:[%s332 + $0x20] sm:$0xff] %vm363, %v611
        %634 = vst.msk [vmem:[%s332 + $0x28] sm:$0xff] %vm363, %v616
        %635 = vst.msk [vmem:[%s332 + $0x30] sm:$0xff] %vm363, %v621
        %636 = vst.msk [vmem:[%s332 + $0x38] sm:$0xff] %vm363, %v626
        %s637 = sand.u32 %s166, 1
        %s638 = scalar_lea.sflag [#allocation5], %s637
        %s639 = sand.u32 %s166, 1
        %s640 = smul.addr %s639, 64
        %s641 = scalar_lea.vmem [#allocation15], %s640
        // Predicated region
        $region69: #{tpu_custom_call.1} parent=43 // pred_check
          %p642 = pneg %p176
        $region70: #{tpu_custom_call.1} parent=43 // pred_check_branch
          %644 = sbr.rel (%p642) target = $region72
        $region71: #{tpu_custom_call.1} parent=43 // pred_region
          %s646 = ssub.s32 1024, 1024
          %647 = vsyncadd %s638, %s646
          %s648 = smul.addr %s27, 8
          %s649 = smul.addr %s648, 128
          %s650 = scalar_lea.hbm %s6, %s649
          %s651 = sshll.u32 %s641, 4
          %s652 = int_to_ptr.vmem [resolvable:$true] %s651
          %657 = dma.vmem_to_hbm [thread:$0]  %s652, 1024, %s650, %s638, 128, 128, 8
        $region72: #{tpu_custom_call.1} parent=43 // pred_fallthru
          _
      $region44: #{tpu_custom_call.1} parent=5 // pred_fallthru
        _
      %p658 = scmp.le.s32.totalorder 2, %s22
      // Predicated region
      $region73: #{tpu_custom_call.1} parent=5 // pred_check
        %p659 = pneg %p658
      $region74: #{tpu_custom_call.1} parent=5 // pred_check_branch
        %661 = sbr.rel (%p659) target = $region76
      $region75: #{tpu_custom_call.1} parent=5 // pred_region
        %s662 = ssub.s32 %s22, 2
        // Predicated region
        $region77: #{tpu_custom_call.1} parent=75 // pred_check
          %p663 = pneg %p182
        $region78: #{tpu_custom_call.1} parent=75 // pred_check_branch
          %665 = sbr.rel (%p663) target = $region80
        $region79: #{tpu_custom_call.1} parent=75 // pred_region
          %s666 = sand.u32 %s167, 1
          %s667 = scalar_lea.sflag [#allocation5], %s666
          %s668 = sand.u32 %s167, 1
          %s669 = smul.addr %s668, 64
          %s670 = scalar_lea.vmem [#allocation15], %s669
          %671 = dma.done %s667, 1024
        $region80: #{tpu_custom_call.1} parent=75 // pred_fallthru
          _
      $region76: #{tpu_custom_call.1} parent=5 // pred_fallthru
        _
    $region6: #{tpu_custom_call.1} parent=1 // loop_footer
      %s26 = sadd.s32 1, %s22
    $region7: #{tpu_custom_call.1} parent=1 // loop_footer_branch
      %21 = sbr.rel target = $region3
    $region8: #{tpu_custom_call.1} parent=1 // loop_exit
      _
    %672 = vsyncpa [#allocation4], 1
    %s673 = scalar_lea.sflag [#allocation4], 1
    %674 = vsyncpa %s673, 1
    %675 = vsyncpa [#allocation5], 1
    %s676 = scalar_lea.sflag [#allocation5], 1
    %677 = vsyncpa %s676, 1
    %678 = vsyncpa [#allocation6], 1
    %s679 = scalar_lea.sflag [#allocation6], 1
    %680 = vsyncpa %s679, 1
    %681 = vsyncpa [#allocation7], 1
    %s682 = scalar_lea.sflag [#allocation7], 1
    %683 = vsyncpa %s682, 1
    %684 = vsyncpa [#allocation10], 1
    %685 = vsyncpa [#allocation13], 1

</llo_original>
